<compile_context>
chip_gen: v6e
topology: v6e:2x2x1
jax: 0.10.0
libtpu: 0.0.40
codegen_flags: <defaults>
</compile_context>

<pallas_src>
import jax
import jax.numpy as jnp
from jax.experimental import pallas as pl
from jax.experimental.pallas import tpu as pltpu


_VMEM = pl.BlockSpec(memory_space=pltpu.MemorySpace.VMEM)
_SMEM = pl.BlockSpec(memory_space=pltpu.MemorySpace.SMEM)


# ----------------------------------------------------------------------------
# Kernels
# ----------------------------------------------------------------------------
def _fused_mlp_values(x_ref, w1_ref, b1_ref, w2_ref, b2_ref):
    """Two lane-dense bf16 MXU matmuls (f32 accum) + f32 SiLU -> (B, G) f32."""
    x = x_ref[...].astype(jnp.bfloat16)                              # (B, D_in)
    # layer 1, all groups fused:  (B, D_in) @ (D_in, G*H) -> (B, G*H)
    h = jnp.dot(x, w1_ref[...], preferred_element_type=jnp.float32) + b1_ref[...]
    h = h * jax.nn.sigmoid(h)                                        # SiLU (EUP + VPU, f32)
    # layer 2, block-diagonal:    (B, G*H) @ (G*H, G) -> (B, G)
    h = h.astype(jnp.bfloat16)
    return jnp.dot(h, w2_ref[...], preferred_element_type=jnp.float32) + b2_ref[...]


def mlp_values_kernel(x_ref, w1_ref, b1_ref, w2_ref, b2_ref, values_ref):
    values_ref[...] = _fused_mlp_values(
        x_ref, w1_ref, b1_ref, w2_ref, b2_ref).astype(values_ref.dtype)


def mlp_loss_kernel(x_ref, w1_ref, b1_ref, w2_ref, b2_ref, r_ref, loss_ref):
    values = _fused_mlp_values(x_ref, w1_ref, b1_ref, w2_ref, b2_ref)  # (B, G) f32
    diff = r_ref[...] - values
    n = diff.shape[0] * diff.shape[1]
    # F.mse_loss default reduction='mean'; scalar exits via SMEM (no masked
    # 1-lane VMEM store, no unused values writeback).
    loss_ref[0, 0] = jnp.sum(diff * diff) * (1.0 / n)


# ----------------------------------------------------------------------------
# One-time weight packing (outside the hot path — call once at init)
# ----------------------------------------------------------------------------
def pack_critics_params(w1, b1, w2, b2):
    """(G,D,H),(G,1,H),(G,H,1),(G,1,1) -> lane-dense fused operands.

    Matmul operands in bf16 (MXU-native, half the DMA bytes); biases in f32.
    """
    G, D_in, H = w1.shape
    w1_flat = jnp.transpose(w1, (1, 0, 2)).reshape(D_in, G * H)      # (D_in, G*H)
    # block-diagonal second layer: row g*H+h, col g carries w2[g, h, 0]
    w2_block = (w2[:, :, 0][:, :, None]
                * jnp.eye(G, dtype=w2.dtype)[:, None, :]).reshape(G * H, G)
    return (w1_flat.astype(jnp.bfloat16),
            b1.reshape(1, G * H).astype(jnp.float32),
            w2_block.astype(jnp.bfloat16),
            b2.reshape(1, G).astype(jnp.float32))


def _cost_estimate(B, D_in, GH, G, with_loss):
    flops = 2 * B * D_in * GH + 2 * B * GH * G + 4 * B * GH
    transcendentals = B * GH                                         # sigmoid
    bytes_accessed = (4 * B * D_in + 2 * D_in * GH + 4 * GH
                      + 2 * GH * G + 4 * G + 4 * B * G)
    if with_loss:
        flops += 3 * B * G
        bytes_accessed += 4 * B * G + 4
    return pl.CostEstimate(flops=flops, transcendentals=transcendentals,
                           bytes_accessed=bytes_accessed)


# ----------------------------------------------------------------------------
# Hot-path wrappers (take pre-packed params)
# ----------------------------------------------------------------------------
@jax.jit
def critics_forward(state, w1_flat, b1_flat, w2_block, b2_flat):
    """Returns critic values, shape (B, G)."""
    B, D_in = state.shape
    GH = w1_flat.shape[1]
    G = w2_block.shape[1]
    return pl.pallas_call(
        mlp_values_kernel,
        out_shape=jax.ShapeDtypeStruct((B, G), jnp.float32),
        in_specs=[_VMEM] * 5,
        out_specs=_VMEM,
        cost_estimate=_cost_estimate(B, D_in, GH, G, with_loss=False),
    )(state, w1_flat, b1_flat, w2_block, b2_flat)


@jax.jit
def critics_forward_loss(state, rewards, w1_flat, b1_flat, w2_block, b2_flat):
    """Returns scalar MSE loss between rewards and critic values (one launch)."""
    B, D_in = state.shape
    GH = w1_flat.shape[1]
    G = w2_block.shape[1]
    loss = pl.pallas_call(
        mlp_loss_kernel,
        out_shape=jax.ShapeDtypeStruct((1, 1), jnp.float32),
        in_specs=[_VMEM] * 6,
        out_specs=_SMEM,
        cost_estimate=_cost_estimate(B, D_in, GH, G, with_loss=True),
    )(state, w1_flat, b1_flat, w2_block, b2_flat, rewards)
    return loss[0, 0]


# ----------------------------------------------------------------------------
# Deterministic parameter init (shapes follow the grouped-MLP head)
# ----------------------------------------------------------------------------
def init_critics_params(key, dim_in, hidden, num_critics):
    k1, k2, k3, k4 = jax.random.split(key, 4)
    s1 = 1.0 / jnp.sqrt(dim_in)
    s2 = 1.0 / jnp.sqrt(hidden)
    w1 = jax.random.uniform(k1, (num_critics, dim_in, hidden), jnp.float32, -s1, s1)
    b1 = jax.random.uniform(k2, (num_critics, 1, hidden), jnp.float32, -s1, s1)
    w2 = jax.random.uniform(k3, (num_critics, hidden, 1), jnp.float32, -s2, s2)
    b2 = jax.random.uniform(k4, (num_critics, 1, 1), jnp.float32, -s2, s2)
    return w1, b1, w2, b2


def reference_forward(state, w1, b1, w2, b2, rewards=None):
    """Plain-JAX f32 reference matching the PyTorch MLP(D_in, H, 1) per-group semantics."""
    h = jnp.einsum('bi,gio->bgo', state, w1) + b1[:, 0, :]      # (B, G, H)
    h = h * jax.nn.sigmoid(h)                                   # SiLU
    v = jnp.einsum('bgi,gio->bgo', h, w2) + b2[:, 0, :]         # (B, G, 1)
    values = v[..., 0]                                          # (B, G)
    if rewards is None:
        return values
    return jnp.mean((rewards - values) ** 2)


if __name__ == "__main__":
    # Small shapes: batch=8, state dim=32, hidden=16, num_critics=4.
    B, D_IN, HIDDEN, G = 8, 32, 16, 4

    key = jax.random.PRNGKey(0)
    kp, ks, kr = jax.random.split(key, 3)

    w1, b1, w2, b2 = init_critics_params(kp, D_IN, HIDDEN, G)
    state = jax.random.normal(ks, (B, D_IN), jnp.float32)
    rewards = jax.random.normal(kr, (B, G), jnp.float32)

    # one-time packing into the fused, lane-dense, bf16 layout (not per step)
    packed = pack_critics_params(w1, b1, w2, b2)
    packed = tuple(jax.block_until_ready(p) for p in packed)

    # forward without rewards -> values (B, G)
    values = jax.block_until_ready(critics_forward(state, *packed))

    # forward with rewards -> scalar MSE loss (loss-only kernel, SMEM exit)
    loss = jax.block_until_ready(critics_forward_loss(state, rewards, *packed))

    # correctness check vs plain-JAX f32 reference; tolerance accounts for the
    # bf16 MXU operands (f32 accumulation).
    ref_values = reference_forward(state, w1, b1, w2, b2)
    ref_loss = reference_forward(state, w1, b1, w2, b2, rewards)
    assert jnp.allclose(values, ref_values, atol=3e-2, rtol=3e-2), (
        float(jnp.max(jnp.abs(values - ref_values))))
    assert jnp.allclose(loss, ref_loss, atol=3e-2, rtol=3e-2), (
        float(loss), float(ref_loss))

    print("KERNEL_OK")
</pallas_src>

<mosaic_0001>
module attributes {stable_mosaic.version = 11 : i64} {
  func.func @mlp_values_kernel(%arg0: memref<8x32xf32, #tpu.memory_space<vmem>>, %arg1: memref<32x64xbf16, #tpu.memory_space<vmem>>, %arg2: memref<1x64xf32, #tpu.memory_space<vmem>>, %arg3: memref<64x4xbf16, #tpu.memory_space<vmem>>, %arg4: memref<1x4xf32, #tpu.memory_space<vmem>>, %arg5: memref<8x4xf32, #tpu.memory_space<vmem>>) attributes {dimension_semantics = [], scalar_prefetch = 0 : i64, scratch_operands = 0 : i64, tpu.core_type = #tpu.core_type<tc>} {
    %c0 = arith.constant 0 : index
    %c0_0 = arith.constant 0 : index
    %0 = vector.load %arg0[%c0, %c0_0] : memref<8x32xf32, #tpu.memory_space<vmem>>, vector<8x32xf32>
    %1 = arith.truncf %0 : vector<8x32xf32> to vector<8x32xbf16>
    %c0_1 = arith.constant 0 : index
    %c0_2 = arith.constant 0 : index
    %2 = vector.load %arg1[%c0_1, %c0_2] : memref<32x64xbf16, #tpu.memory_space<vmem>>, vector<32x64xbf16>
    %cst = arith.constant dense<0.000000e+00> : vector<8x64xf32>
    %3 = tpu.matmul %1, %2, %cst {dimension_numbers = #tpu.dot_dimension_numbers<[1], [0], [0], [1], [0, 0, 1, 1], [], []>} : vector<8x32xbf16>, vector<32x64xbf16>, vector<8x64xf32> -> vector<8x64xf32>
    %c0_3 = arith.constant 0 : index
    %c0_4 = arith.constant 0 : index
    %4 = vector.load %arg2[%c0_3, %c0_4] : memref<1x64xf32, #tpu.memory_space<vmem>>, vector<1x64xf32>
    %5 = vector.broadcast %4 : vector<1x64xf32> to vector<8x64xf32>
    %6 = arith.addf %3, %5 : vector<8x64xf32>
    %7 = arith.negf %6 : vector<8x64xf32>
    %8 = math.exp %7 : vector<8x64xf32>
    %cst_5 = arith.constant 1.000000e+00 : f32
    %9 = vector.broadcast %cst_5 : f32 to vector<8x64xf32>
    %10 = arith.addf %9, %8 : vector<8x64xf32>
    %11 = arith.divf %9, %10 : vector<8x64xf32>
    %12 = arith.mulf %6, %11 : vector<8x64xf32>
    %13 = arith.truncf %12 : vector<8x64xf32> to vector<8x64xbf16>
    %c0_6 = arith.constant 0 : index
    %c0_7 = arith.constant 0 : index
    %14 = vector.load %arg3[%c0_6, %c0_7] : memref<64x4xbf16, #tpu.memory_space<vmem>>, vector<64x4xbf16>
    %cst_8 = arith.constant dense<0.000000e+00> : vector<8x4xf32>
    %15 = tpu.matmul %13, %14, %cst_8 {dimension_numbers = #tpu.dot_dimension_numbers<[1], [0], [0], [1], [0, 0, 1, 1], [], []>} : vector<8x64xbf16>, vector<64x4xbf16>, vector<8x4xf32> -> vector<8x4xf32>
    %c0_9 = arith.constant 0 : index
    %c0_10 = arith.constant 0 : index
    %16 = vector.load %arg4[%c0_9, %c0_10] : memref<1x4xf32, #tpu.memory_space<vmem>>, vector<1x4xf32>
    %17 = vector.broadcast %16 : vector<1x4xf32> to vector<8x4xf32>
    %18 = arith.addf %15, %17 : vector<8x4xf32>
    %c0_11 = arith.constant 0 : index
    %c0_12 = arith.constant 0 : index
    %19 = vector.load %arg5[%c0_11, %c0_12] : memref<8x4xf32, #tpu.memory_space<vmem>>, vector<8x4xf32>
    tpu.vector_store %arg5[%c0_11, %c0_12], %18 {strides = array<i32>} : memref<8x4xf32, #tpu.memory_space<vmem>>, vector<8x4xf32>,
    return
  }
}

</mosaic_0001>

<llo_original>
// kernel: critics_forward.1
$region0: #{critics_forward.1}
  #allocation0 [shape = 'u32[]', space=smem, size = 0x4, offset = 0x4, fixed_abs, tag = 'smem constant byte address 0x4 - core index']
  #allocation1 [shape = 'u32[144,128]{1,0:T(1,128)}', space=vmem, size = 0x12000, scoped, tag = 'internal scratch']
  %s0 = inlined_call_operand.vmem [shape: f32[8,32], index: 0, kind: input, shape index: {}]
  %s1 = inlined_call_operand.vmem [shape: bf16[32,64], index: 1, kind: input, shape index: {}]
  %s2 = inlined_call_operand.vmem [shape: f32[1,64], index: 2, kind: input, shape index: {}]
  %s3 = inlined_call_operand.vmem [shape: bf16[64,4], index: 3, kind: input, shape index: {}]
  %s4 = inlined_call_operand.vmem [shape: f32[1,4], index: 4, kind: input, shape index: {}]
  %s5 = inlined_call_operand.vmem [shape: f32[8,4], index: 5, kind: output, shape index: {}]
  %s6 = sld [smem:[#allocation0]]
  $region30: #{critics_forward.1} parent=0
    _
  %s8 = ssub.s32 1, %s6
  %s9 = scalar_select 0, %s8, %s6
  // Predicated region
  $region2: #{critics_forward.1} parent=0 // pred_check
    _
  $region3: #{critics_forward.1} parent=0 // pred_check_branch
    %11 = sbr.rel (0) target = $region5
  $region4: #{critics_forward.1} parent=0 // pred_region
    _
  $region5: #{critics_forward.1} parent=0 // pred_fallthru
    _
  // Predicated region
  $region6: #{critics_forward.1} parent=0 // pred_check
    _
  $region7: #{critics_forward.1} parent=0 // pred_check_branch
    %13 = sbr.rel (0) target = $region9
  $region8: #{critics_forward.1} parent=0 // pred_region
    _
  $region9: #{critics_forward.1} parent=0 // pred_fallthru
    _
  // Predicated region
  $region10: #{critics_forward.1} parent=0 // pred_check
    _
  $region11: #{critics_forward.1} parent=0 // pred_check_branch
    %15 = sbr.rel (0) target = $region13
  $region12: #{critics_forward.1} parent=0 // pred_region
    _
  $region13: #{critics_forward.1} parent=0 // pred_fallthru
    _
  // Predicated region
  $region14: #{critics_forward.1} parent=0 // pred_check
    _
  $region15: #{critics_forward.1} parent=0 // pred_check_branch
    %17 = sbr.rel (0) target = $region17
  $region16: #{critics_forward.1} parent=0 // pred_region
    _
  $region17: #{critics_forward.1} parent=0 // pred_fallthru
    _
  // Predicated region
  $region18: #{critics_forward.1} parent=0 // pred_check
    _
  $region19: #{critics_forward.1} parent=0 // pred_check_branch
    %19 = sbr.rel (0) target = $region21
  $region20: #{critics_forward.1} parent=0 // pred_region
    _
  $region21: #{critics_forward.1} parent=0 // pred_fallthru
    _
  %v21 = vld [vmem:[%s0] sm:$0xff]
  %v22 = vpack.c.bf16 %v21, %v21
  %v23 = vld [vmem:[%s1] sm:$0xf]
  %v24 = vld [vmem:[%s1 + $0x4] sm:$0xf]
  %v25 = vld [vmem:[%s1 + $0x8] sm:$0xf]
  %v26 = vld [vmem:[%s1 + $0xc] sm:$0xf]
  %v27 = vld [vmem:[%s2] sm:$0x1]
  %v29 = vlaneseq
  %v30 = vshrl.u32 %v29, 7
  %v31 = vsub.s32 0, %v30
  %v32 = vrot.slane %v27, %v31
  %v38 = vunpack.c.l.b16 %v23
  %v39 = vunpack.c.l.b16 %v24
  %v40 = vunpack.c.l.b16 %v25
  %v41 = vunpack.c.l.b16 %v26
  %v42 = vpack.c.b16 %v39, %v38
  %v43 = vpack.c.b16 %v41, %v40
  %vm46 = vcmask 261120
  %v48 = vsel %vm46, %v22, 0
  %50 = vmatprep.subr.bf16.mxu0 0
  %51 = vmatpush1.bf16.msra.mxu0 0
  %52 = vmatprep.subr.bf16.mxu0 0
  %53 = vmatpush1.bf16.msra.mxu0 0
  %54 = vmatprep.subr.bf16.mxu0 0
  %55 = vmatpush1.bf16.msra.mxu0 0
  %56 = vmatprep.subr.bf16.mxu0 0
  %57 = vmatpush1.bf16.msra.mxu0 0
  %58 = vmatprep.subr.bf16.mxu0 0
  %59 = vmatpush1.bf16.msra.mxu0 0
  %60 = vmatprep.subr.bf16.mxu0 0
  %61 = vmatpush1.bf16.msra.mxu0 0
  %62 = vmatprep.subr.bf16.mxu0 0
  %63 = vmatpush1.bf16.msra.mxu0 %v43
  %64 = vmatprep.subr.bf16.mxu0 0
  %65 = vmatpush1.bf16.msra.mxu0 %v42
  %66 = vmatprep.subr.bf16.mxu0 0
  %67 = vmatpush2.bf16.msra.mxu0 0
  %68 = vmatprep.subr.bf16.mxu0 0
  %69 = vmatpush2.bf16.msra.mxu0 0
  %70 = vmatprep.subr.bf16.mxu0 0
  %71 = vmatpush2.bf16.msra.mxu0 0
  %72 = vmatprep.subr.bf16.mxu0 0
  %73 = vmatpush2.bf16.msra.mxu0 0
  %74 = vmatprep.subr.bf16.mxu0 0
  %75 = vmatpush2.bf16.msra.mxu0 0
  %76 = vmatprep.subr.bf16.mxu0 0
  %77 = vmatpush2.bf16.msra.mxu0 0
  %78 = vmatprep.subr.bf16.mxu0 0
  %79 = vmatpush2.bf16.msra.mxu0 0
  %80 = vmatprep.subr.bf16.mxu0 0
  %81 = vmatpush2.bf16.msra.mxu0 0
  %82 = vmatprep.mubr.bf16.mxu0 0
  %83 = vmatmul.mubr.bf16.gmra.mxu0 %v48
  %v84 = vpop.f32.mrf.mxu0
  %v85 = vadd.f32 %v32, %v84
  %v86 = vpop.f32.mrf.mxu0
  %v87 = vpop.f32.mrf.mxu0
  %v88 = vpop.f32.mrf.mxu0
  %89 = vdwg.mxu0
  %v90 = vxor.u32 %v85, 2147483648
  %v91 = vmul.f32 %v90, 1.442695
  %v92 = vpow.pop %v91
  %v93 = vadd.f32 %v92, 1.0
  %v94 = vrcp.pop %v93
  %v95 = vmul.f32 1.0, %v94
  %v96 = vmul.f32 %v85, %v95
  %v97 = vpack.c.bf16 %v96, %v96
  %v98 = vld [vmem:[%s3] sm:$0xf]
  %v99 = vld [vmem:[%s3 + $0x4] sm:$0xf]
  %v100 = vld [vmem:[%s3 + $0x8] sm:$0xf]
  %v101 = vld [vmem:[%s3 + $0xc] sm:$0xf]
  %v102 = vld [vmem:[%s3 + $0x10] sm:$0xf]
  %v103 = vld [vmem:[%s3 + $0x14] sm:$0xf]
  %v104 = vld [vmem:[%s3 + $0x18] sm:$0xf]
  %v105 = vld [vmem:[%s3 + $0x1c] sm:$0xf]
  %v106 = vld [vmem:[%s4] sm:$0x1]
  %v108 = vlaneseq
  %v109 = vshrl.u32 %v108, 7
  %v110 = vsub.s32 0, %v109
  %v111 = vrot.slane %v106, %v110
  %v121 = vunpack.c.l.b16 %v98
  %v122 = vunpack.c.l.b16 %v99
  %v123 = vunpack.c.l.b16 %v100
  %v124 = vunpack.c.l.b16 %v101
  %v125 = vunpack.c.l.b16 %v102
  %v126 = vunpack.c.l.b16 %v103
  %v127 = vunpack.c.l.b16 %v104
  %v128 = vunpack.c.l.b16 %v105
  %v129 = vpack.c.b16 %v122, %v121
  %v130 = vpack.c.b16 %v124, %v123
  %v131 = vpack.c.b16 %v126, %v125
  %v132 = vpack.c.b16 %v128, %v127
  %vm137 = vcmask 523264
  %v139 = vsel %vm137, %v97, 0
  %141 = vmatprep.subr.bf16.mxu0 0
  %142 = vmatpush1.bf16.msra.mxu0 0
  %143 = vmatprep.subr.bf16.mxu0 0
  %144 = vmatpush1.bf16.msra.mxu0 0
  %145 = vmatprep.subr.bf16.mxu0 0
  %146 = vmatpush1.bf16.msra.mxu0 0
  %147 = vmatprep.subr.bf16.mxu0 0
  %148 = vmatpush1.bf16.msra.mxu0 0
  %149 = vmatprep.subr.bf16.mxu0 0
  %150 = vmatpush1.bf16.msra.mxu0 %v132
  %151 = vmatprep.subr.bf16.mxu0 0
  %152 = vmatpush1.bf16.msra.mxu0 %v131
  %153 = vmatprep.subr.bf16.mxu0 0
  %154 = vmatpush1.bf16.msra.mxu0 %v130
  %155 = vmatprep.subr.bf16.mxu0 0
  %156 = vmatpush1.bf16.msra.mxu0 %v129
  %157 = vmatprep.subr.bf16.mxu0 0
  %158 = vmatpush2.bf16.msra.mxu0 0
  %159 = vmatprep.subr.bf16.mxu0 0
  %160 = vmatpush2.bf16.msra.mxu0 0
  %161 = vmatprep.subr.bf16.mxu0 0
  %162 = vmatpush2.bf16.msra.mxu0 0
  %163 = vmatprep.subr.bf16.mxu0 0
  %164 = vmatpush2.bf16.msra.mxu0 0
  %165 = vmatprep.subr.bf16.mxu0 0
  %166 = vmatpush2.bf16.msra.mxu0 0
  %167 = vmatprep.subr.bf16.mxu0 0
  %168 = vmatpush2.bf16.msra.mxu0 0
  %169 = vmatprep.subr.bf16.mxu0 0
  %170 = vmatpush2.bf16.msra.mxu0 0
  %171 = vmatprep.subr.bf16.mxu0 0
  %172 = vmatpush2.bf16.msra.mxu0 0
  %173 = vmatprep.mubr.bf16.mxu0 0
  %174 = vmatmul.mubr.bf16.gmra.mxu0 %v139
  %v175 = vpop.f32.mrf.mxu0
  %v176 = vadd.f32 %v111, %v175
  %v177 = vpop.f32.mrf.mxu0
  %v178 = vpop.f32.mrf.mxu0
  %v179 = vpop.f32.mrf.mxu0
  %180 = vdwg.mxu0
  %vm181 = vcmask 31744
  %182 = vst.msk [vmem:[%s5] sm:$0xff] %vm181, %v176
  // Predicated region
  $region22: #{critics_forward.1} parent=0 // pred_check
    _
  $region23: #{critics_forward.1} parent=0 // pred_check_branch
    %184 = sbr.rel (0) target = $region25
  $region24: #{critics_forward.1} parent=0 // pred_region
    _
  $region25: #{critics_forward.1} parent=0 // pred_fallthru
    _
  // Predicated region
  $region26: #{critics_forward.1} parent=0 // pred_check
    _
  $region27: #{critics_forward.1} parent=0 // pred_check_branch
    %186 = sbr.rel (0) target = $region29
  $region28: #{critics_forward.1} parent=0 // pred_region
    _
  $region29: #{critics_forward.1} parent=0 // pred_fallthru
    _

</llo_original>
